<compile_context>
chip_gen: v7x
topology: tpu7x:2x2x1
jax: 0.10.0
libtpu: 0.0.40
codegen_flags: <defaults>
</compile_context>

<pallas_src>
import functools

import jax
import jax.numpy as jnp
from jax import lax
from jax.experimental import pallas as pl
from jax.experimental.pallas import tpu as pltpu

INPUTSIZE = 4
HIDDENSIZE = 10
OUTPUTSIZE = 4

LANE = 128        # batch elements per lane row
MAX_TBS = 1024    # sublane rows per grid step  -> 1024*128 = 131072 rows/step
MIN_STEPS = 4     # keep >= ~4 grid steps when the batch allows (pipelining, 2 TCs)
CHUNK = 8         # sublane rows per in-kernel chunk (1 vreg per slab -> no spills)

FLOPS_PER_ROW = 175          # ~(4->10 FMAs) + (10->4 FMAs) + log_softmax adds/maxes
TRANS_PER_ROW = 15           # 10 tanh + 4 exp + 1 log
BYTES_PER_ROW = (INPUTSIZE + OUTPUTSIZE) * 4


def _mlp_kernel(x_ref, w1_ref, b1_ref, w2_ref, b2_ref, o_ref, *, chunk, n_chunks):
    # x_ref:  (INPUTSIZE, TBS, 128) VMEM   -- batch on (sublane, lane)
    # w*/b*:  SMEM                          -- read element-wise, broadcast on VPU
    # o_ref:  (OUTPUTSIZE, TBS, 128) VMEM
    # The block is processed in `chunk`-row pieces so every intermediate
    # (10 hidden slabs, 4 logits, softmax temps) stays in vregs.

    def one_chunk(c, carry=None):
        r = c * chunk
        if not isinstance(c, int):
            r = pl.multiple_of(r, chunk)      # aligned dynamic sublane offset
        rows = pl.ds(r, chunk)

        # ---- load the 4 input slabs for this chunk: each (chunk, 128) ----
        x = [x_ref[k, rows, :] for k in range(INPUTSIZE)]

        # ---- layer 1: 4 -> 10, unrolled scalar*vector FMAs, tanh on EUP ----
        h = []
        for j in range(HIDDENSIZE):
            acc = x[0] * w1_ref[0, j]
            for k in range(1, INPUTSIZE):
                acc = acc + x[k] * w1_ref[k, j]
            h.append(jnp.tanh(acc + b1_ref[j]))

        # ---- layer 2: 10 -> 4 ----
        z = []
        for j in range(OUTPUTSIZE):
            acc = h[0] * w2_ref[0, j]
            for k in range(1, HIDDENSIZE):
                acc = acc + h[k] * w2_ref[k, j]
            z.append(acc + b2_ref[j])

        # ---- log_softmax over the class axis (elementwise across 4 slabs) ----
        m = z[0]
        for j in range(1, OUTPUTSIZE):
            m = jnp.maximum(m, z[j])
        s = [zj - m for zj in z]
        e_sum = jnp.exp(s[0])
        for j in range(1, OUTPUTSIZE):
            e_sum = e_sum + jnp.exp(s[j])
        lse = jnp.log(e_sum)
        for j in range(OUTPUTSIZE):
            o_ref[j, rows, :] = s[j] - lse     # full-lane (chunk,128) stores
        return carry

    if n_chunks <= 2:
        for c in range(n_chunks):              # static tiny path
            one_chunk(c)
    else:
        lax.fori_loop(0, n_chunks, one_chunk, None, unroll=min(4, n_chunks))


def _pick_block_rows(nb):
    """Sublane rows per grid step (compile-time)."""
    if nb <= 8:
        return nb                              # single tiny block (== full dim)
    tbs = min(MAX_TBS, pl.cdiv(nb, MIN_STEPS))
    return max(8, ((tbs + 7) // 8) * 8)        # multiple of 8 for (8,128) tiling


def net_forward_cnb(x_cnb, w1, b1, w2, b2):
    """Layout-native entry: x_cnb is (INPUTSIZE, NB, 128), returns (OUTPUTSIZE, NB, 128).

    Use this when the surrounding graph keeps activations in the lane-dense
    transposed layout (no HBM transpose passes at all)."""
    c, nb, lane = x_cnb.shape
    assert c == INPUTSIZE and lane == LANE
    tbs = _pick_block_rows(nb)
    nb_pad = pl.cdiv(nb, tbs) * tbs
    if nb_pad != nb:
        x_cnb = jnp.pad(x_cnb, ((0, 0), (0, nb_pad - nb), (0, 0)))

    chunk = CHUNK if tbs % CHUNK == 0 else tbs
    n_chunks = tbs // chunk
    kernel = functools.partial(_mlp_kernel, chunk=chunk, n_chunks=n_chunks)

    n_rows = nb_pad * LANE
    out = pl.pallas_call(
        kernel,
        out_shape=jax.ShapeDtypeStruct((OUTPUTSIZE, nb_pad, LANE), jnp.float32),
        grid=(nb_pad // tbs,),
        in_specs=[
            pl.BlockSpec((INPUTSIZE, tbs, LANE), lambda i: (0, i, 0)),
            pl.BlockSpec(memory_space=pltpu.MemorySpace.SMEM),   # w1 (4, 10)
            pl.BlockSpec(memory_space=pltpu.MemorySpace.SMEM),   # b1 (10,)
            pl.BlockSpec(memory_space=pltpu.MemorySpace.SMEM),   # w2 (10, 4)
            pl.BlockSpec(memory_space=pltpu.MemorySpace.SMEM),   # b2 (4,)
        ],
        out_specs=pl.BlockSpec((OUTPUTSIZE, tbs, LANE), lambda i: (0, i, 0)),
        compiler_params=pltpu.CompilerParams(
            dimension_semantics=("parallel",),          # shards across TCs on v7x
            vmem_limit_bytes=32 * 1024 * 1024,          # covers v5e 16 MiB default
        ),
        cost_estimate=pl.CostEstimate(
            flops=FLOPS_PER_ROW * n_rows,
            transcendentals=TRANS_PER_ROW * n_rows,
            bytes_accessed=BYTES_PER_ROW * n_rows,
        ),
    )(x_cnb, w1, b1, w2, b2)

    return out[:, :nb, :] if nb_pad != nb else out


def net_forward(x, w1, b1, w2, b2):
    """PyTorch-compatible wrapper: (B, 4) -> (B, 4).

    The pad/transpose here is pure layout plumbing around the kernel; prefer
    net_forward_cnb if the producer/consumer can keep the (C, NB, 128) layout."""
    B = x.shape[0]
    nb = pl.cdiv(B, LANE)
    Bp = nb * LANE
    xp = jnp.pad(x, ((0, Bp - B), (0, 0)))                       # (Bp, 4)
    x_cnb = xp.T.reshape(INPUTSIZE, nb, LANE)                    # (4, NB, 128)
    out = net_forward_cnb(x_cnb, w1, b1, w2, b2)                 # (4, NB, 128)
    return out.reshape(OUTPUTSIZE, Bp).T[:B]                     # (B, 4)


def init_params(key):
    # Deterministic init mimicking nn.Linear default: U(-1/sqrt(fan_in), +1/sqrt(fan_in))
    k1, k2, k3, k4 = jax.random.split(key, 4)
    bound1 = 1.0 / jnp.sqrt(INPUTSIZE)
    bound2 = 1.0 / jnp.sqrt(HIDDENSIZE)
    # weights stored pre-transposed: (in, out); biases 1-D (live in SMEM)
    w1 = jax.random.uniform(k1, (INPUTSIZE, HIDDENSIZE), jnp.float32, -bound1, bound1)
    b1 = jax.random.uniform(k2, (HIDDENSIZE,), jnp.float32, -bound1, bound1)
    w2 = jax.random.uniform(k3, (HIDDENSIZE, OUTPUTSIZE), jnp.float32, -bound2, bound2)
    b2 = jax.random.uniform(k4, (OUTPUTSIZE,), jnp.float32, -bound2, bound2)
    return w1, b1, w2, b2


def _reference(x, w1, b1, w2, b2):
    h = jnp.tanh(x @ w1 + b1[None, :])
    z = h @ w2 + b2[None, :]
    return jax.nn.log_softmax(z, axis=-1)


if __name__ == "__main__":
    key = jax.random.PRNGKey(0)
    kx, kx2, kx3, kp = jax.random.split(key, 4)
    w1, b1, w2, b2 = init_params(kp)

    fwd = jax.jit(net_forward)
    fwd_cnb = jax.jit(net_forward_cnb)

    # small batch (exercises padding up to one 128-lane row, single tiny block)
    x_small = jax.random.normal(kx, (8, INPUTSIZE), jnp.float32)
    out_small = fwd(x_small, w1, b1, w2, b2)
    jax.block_until_ready(out_small)
    ref_small = _reference(x_small, w1, b1, w2, b2)
    assert out_small.shape == (8, OUTPUTSIZE)
    assert jnp.allclose(out_small, ref_small, atol=3e-5), "mismatch vs reference (B=8)"

    # non-multiple-of-128 batch (exercises multi-sublane tile + padding path)
    x_big = jax.random.normal(kx2, (1000, INPUTSIZE), jnp.float32)
    out_big = fwd(x_big, w1, b1, w2, b2)
    jax.block_until_ready(out_big)
    ref_big = _reference(x_big, w1, b1, w2, b2)
    assert out_big.shape == (1000, OUTPUTSIZE)
    assert jnp.allclose(out_big, ref_big, atol=3e-5), "mismatch vs reference (B=1000)"

    # larger batch: multi-step parallel grid + chunked fori_loop inside the kernel
    x_large = jax.random.normal(kx3, (131072, INPUTSIZE), jnp.float32)
    out_large = fwd(x_large, w1, b1, w2, b2)
    jax.block_until_ready(out_large)
    ref_large = _reference(x_large, w1, b1, w2, b2)
    assert out_large.shape == (131072, OUTPUTSIZE)
    assert jnp.allclose(out_large, ref_large, atol=3e-5), "mismatch vs reference (B=131072)"

    # layout-native path: no wrapper transposes, (C, NB, 128) in and out
    x1024 = jax.random.normal(kx, (1024, INPUTSIZE), jnp.float32)
    x_cnb = x1024.T.reshape(INPUTSIZE, 1024 // LANE, LANE)
    out_cnb = fwd_cnb(x_cnb, w1, b1, w2, b2)
    jax.block_until_ready(out_cnb)
    ref_cnb = _reference(x1024, w1, b1, w2, b2).T.reshape(OUTPUTSIZE, 1024 // LANE, LANE)
    assert out_cnb.shape == (OUTPUTSIZE, 1024 // LANE, LANE)
    assert jnp.allclose(out_cnb, ref_cnb, atol=3e-5), "mismatch vs reference (cnb path)"

    print("KERNEL_OK")
</pallas_src>

<mosaic_0001>
module attributes {stable_mosaic.version = 11 : i64} {
  func.func @_mlp_kernel(%arg0: i32, %arg1: memref<4x1x128xf32, #tpu.memory_space<vmem>>, %arg2: memref<4x10xf32, #tpu.memory_space<smem>>, %arg3: memref<10xf32, #tpu.memory_space<smem>>, %arg4: memref<10x4xf32, #tpu.memory_space<smem>>, %arg5: memref<4xf32, #tpu.memory_space<smem>>, %arg6: memref<4x1x128xf32, #tpu.memory_space<vmem>>) attributes {dimension_semantics = [#tpu.dimension_semantics<parallel>], iteration_bounds = array<i64: 1>, scalar_prefetch = 0 : i64, scratch_operands = 0 : i64, tpu.core_type = #tpu.core_type<tc>, window_params = [{transform_indices = @transform_0, window_bounds = array<i64: 4, 1, 128>}, {transform_indices = @transform_1, window_bounds = array<i64: 4, 10>}, {transform_indices = @transform_2, window_bounds = array<i64: 10>}, {transform_indices = @transform_3, window_bounds = array<i64: 10, 4>}, {transform_indices = @transform_4, window_bounds = array<i64: 4>}, {transform_indices = @transform_5, window_bounds = array<i64: 4, 1, 128>}]} {
    %c0 = arith.constant 0 : index
    %c0_0 = arith.constant 0 : index
    %c0_1 = arith.constant 0 : index
    %0 = vector.load %arg1[%c0, %c0_0, %c0_1] : memref<4x1x128xf32, #tpu.memory_space<vmem>>, vector<1x1x128xf32>
    %1 = vector.shape_cast %0 : vector<1x1x128xf32> to vector<1x128xf32>
    %c1 = arith.constant 1 : index
    %c0_2 = arith.constant 0 : index
    %c0_3 = arith.constant 0 : index
    %2 = vector.load %arg1[%c1, %c0_2, %c0_3] : memref<4x1x128xf32, #tpu.memory_space<vmem>>, vector<1x1x128xf32>
    %3 = vector.shape_cast %2 : vector<1x1x128xf32> to vector<1x128xf32>
    %c2 = arith.constant 2 : index
    %c0_4 = arith.constant 0 : index
    %c0_5 = arith.constant 0 : index
    %4 = vector.load %arg1[%c2, %c0_4, %c0_5] : memref<4x1x128xf32, #tpu.memory_space<vmem>>, vector<1x1x128xf32>
    %5 = vector.shape_cast %4 : vector<1x1x128xf32> to vector<1x128xf32>
    %c3 = arith.constant 3 : index
    %c0_6 = arith.constant 0 : index
    %c0_7 = arith.constant 0 : index
    %6 = vector.load %arg1[%c3, %c0_6, %c0_7] : memref<4x1x128xf32, #tpu.memory_space<vmem>>, vector<1x1x128xf32>
    %7 = vector.shape_cast %6 : vector<1x1x128xf32> to vector<1x128xf32>
    %c0_8 = arith.constant 0 : index
    %c0_9 = arith.constant 0 : index
    %8 = memref.load %arg2[%c0_8, %c0_9] : memref<4x10xf32, #tpu.memory_space<smem>>
    %9 = vector.broadcast %8 : f32 to vector<1x128xf32>
    %10 = arith.mulf %1, %9 : vector<1x128xf32>
    %c1_10 = arith.constant 1 : index
    %c0_11 = arith.constant 0 : index
    %11 = memref.load %arg2[%c1_10, %c0_11] : memref<4x10xf32, #tpu.memory_space<smem>>
    %12 = vector.broadcast %11 : f32 to vector<1x128xf32>
    %13 = arith.mulf %3, %12 : vector<1x128xf32>
    %14 = arith.addf %10, %13 : vector<1x128xf32>
    %c2_12 = arith.constant 2 : index
    %c0_13 = arith.constant 0 : index
    %15 = memref.load %arg2[%c2_12, %c0_13] : memref<4x10xf32, #tpu.memory_space<smem>>
    %16 = vector.broadcast %15 : f32 to vector<1x128xf32>
    %17 = arith.mulf %5, %16 : vector<1x128xf32>
    %18 = arith.addf %14, %17 : vector<1x128xf32>
    %c3_14 = arith.constant 3 : index
    %c0_15 = arith.constant 0 : index
    %19 = memref.load %arg2[%c3_14, %c0_15] : memref<4x10xf32, #tpu.memory_space<smem>>
    %20 = vector.broadcast %19 : f32 to vector<1x128xf32>
    %21 = arith.mulf %7, %20 : vector<1x128xf32>
    %22 = arith.addf %18, %21 : vector<1x128xf32>
    %c0_16 = arith.constant 0 : index
    %23 = memref.load %arg3[%c0_16] : memref<10xf32, #tpu.memory_space<smem>>
    %24 = vector.broadcast %23 : f32 to vector<1x128xf32>
    %25 = arith.addf %22, %24 : vector<1x128xf32>
    %26 = math.tanh %25 : vector<1x128xf32>
    %c0_17 = arith.constant 0 : index
    %c1_18 = arith.constant 1 : index
    %27 = memref.load %arg2[%c0_17, %c1_18] : memref<4x10xf32, #tpu.memory_space<smem>>
    %28 = vector.broadcast %27 : f32 to vector<1x128xf32>
    %29 = arith.mulf %1, %28 : vector<1x128xf32>
    %c1_19 = arith.constant 1 : index
    %c1_20 = arith.constant 1 : index
    %30 = memref.load %arg2[%c1_19, %c1_20] : memref<4x10xf32, #tpu.memory_space<smem>>
    %31 = vector.broadcast %30 : f32 to vector<1x128xf32>
    %32 = arith.mulf %3, %31 : vector<1x128xf32>
    %33 = arith.addf %29, %32 : vector<1x128xf32>
    %c2_21 = arith.constant 2 : index
    %c1_22 = arith.constant 1 : index
    %34 = memref.load %arg2[%c2_21, %c1_22] : memref<4x10xf32, #tpu.memory_space<smem>>
    %35 = vector.broadcast %34 : f32 to vector<1x128xf32>
    %36 = arith.mulf %5, %35 : vector<1x128xf32>
    %37 = arith.addf %33, %36 : vector<1x128xf32>
    %c3_23 = arith.constant 3 : index
    %c1_24 = arith.constant 1 : index
    %38 = memref.load %arg2[%c3_23, %c1_24] : memref<4x10xf32, #tpu.memory_space<smem>>
    %39 = vector.broadcast %38 : f32 to vector<1x128xf32>
    %40 = arith.mulf %7, %39 : vector<1x128xf32>
    %41 = arith.addf %37, %40 : vector<1x128xf32>
    %c1_25 = arith.constant 1 : index
    %42 = memref.load %arg3[%c1_25] : memref<10xf32, #tpu.memory_space<smem>>
    %43 = vector.broadcast %42 : f32 to vector<1x128xf32>
    %44 = arith.addf %41, %43 : vector<1x128xf32>
    %45 = math.tanh %44 : vector<1x128xf32>
    %c0_26 = arith.constant 0 : index
    %c2_27 = arith.constant 2 : index
    %46 = memref.load %arg2[%c0_26, %c2_27] : memref<4x10xf32, #tpu.memory_space<smem>>
    %47 = vector.broadcast %46 : f32 to vector<1x128xf32>
    %48 = arith.mulf %1, %47 : vector<1x128xf32>
    %c1_28 = arith.constant 1 : index
    %c2_29 = arith.constant 2 : index
    %49 = memref.load %arg2[%c1_28, %c2_29] : memref<4x10xf32, #tpu.memory_space<smem>>
    %50 = vector.broadcast %49 : f32 to vector<1x128xf32>
    %51 = arith.mulf %3, %50 : vector<1x128xf32>
    %52 = arith.addf %48, %51 : vector<1x128xf32>
    %c2_30 = arith.constant 2 : index
    %c2_31 = arith.constant 2 : index
    %53 = memref.load %arg2[%c2_30, %c2_31] : memref<4x10xf32, #tpu.memory_space<smem>>
    %54 = vector.broadcast %53 : f32 to vector<1x128xf32>
    %55 = arith.mulf %5, %54 : vector<1x128xf32>
    %56 = arith.addf %52, %55 : vector<1x128xf32>
    %c3_32 = arith.constant 3 : index
    %c2_33 = arith.constant 2 : index
    %57 = memref.load %arg2[%c3_32, %c2_33] : memref<4x10xf32, #tpu.memory_space<smem>>
    %58 = vector.broadcast %57 : f32 to vector<1x128xf32>
    %59 = arith.mulf %7, %58 : vector<1x128xf32>
    %60 = arith.addf %56, %59 : vector<1x128xf32>
    %c2_34 = arith.constant 2 : index
    %61 = memref.load %arg3[%c2_34] : memref<10xf32, #tpu.memory_space<smem>>
    %62 = vector.broadcast %61 : f32 to vector<1x128xf32>
    %63 = arith.addf %60, %62 : vector<1x128xf32>
    %64 = math.tanh %63 : vector<1x128xf32>
    %c0_35 = arith.constant 0 : index
    %c3_36 = arith.constant 3 : index
    %65 = memref.load %arg2[%c0_35, %c3_36] : memref<4x10xf32, #tpu.memory_space<smem>>
    %66 = vector.broadcast %65 : f32 to vector<1x128xf32>
    %67 = arith.mulf %1, %66 : vector<1x128xf32>
    %c1_37 = arith.constant 1 : index
    %c3_38 = arith.constant 3 : index
    %68 = memref.load %arg2[%c1_37, %c3_38] : memref<4x10xf32, #tpu.memory_space<smem>>
    %69 = vector.broadcast %68 : f32 to vector<1x128xf32>
    %70 = arith.mulf %3, %69 : vector<1x128xf32>
    %71 = arith.addf %67, %70 : vector<1x128xf32>
    %c2_39 = arith.constant 2 : index
    %c3_40 = arith.constant 3 : index
    %72 = memref.load %arg2[%c2_39, %c3_40] : memref<4x10xf32, #tpu.memory_space<smem>>
    %73 = vector.broadcast %72 : f32 to vector<1x128xf32>
    %74 = arith.mulf %5, %73 : vector<1x128xf32>
    %75 = arith.addf %71, %74 : vector<1x128xf32>
    %c3_41 = arith.constant 3 : index
    %c3_42 = arith.constant 3 : index
    %76 = memref.load %arg2[%c3_41, %c3_42] : memref<4x10xf32, #tpu.memory_space<smem>>
    %77 = vector.broadcast %76 : f32 to vector<1x128xf32>
    %78 = arith.mulf %7, %77 : vector<1x128xf32>
    %79 = arith.addf %75, %78 : vector<1x128xf32>
    %c3_43 = arith.constant 3 : index
    %80 = memref.load %arg3[%c3_43] : memref<10xf32, #tpu.memory_space<smem>>
    %81 = vector.broadcast %80 : f32 to vector<1x128xf32>
    %82 = arith.addf %79, %81 : vector<1x128xf32>
    %83 = math.tanh %82 : vector<1x128xf32>
    %c0_44 = arith.constant 0 : index
    %c4 = arith.constant 4 : index
    %84 = memref.load %arg2[%c0_44, %c4] : memref<4x10xf32, #tpu.memory_space<smem>>
    %85 = vector.broadcast %84 : f32 to vector<1x128xf32>
    %86 = arith.mulf %1, %85 : vector<1x128xf32>
    %c1_45 = arith.constant 1 : index
    %c4_46 = arith.constant 4 : index
    %87 = memref.load %arg2[%c1_45, %c4_46] : memref<4x10xf32, #tpu.memory_space<smem>>
    %88 = vector.broadcast %87 : f32 to vector<1x128xf32>
    %89 = arith.mulf %3, %88 : vector<1x128xf32>
    %90 = arith.addf %86, %89 : vector<1x128xf32>
    %c2_47 = arith.constant 2 : index
    %c4_48 = arith.constant 4 : index
    %91 = memref.load %arg2[%c2_47, %c4_48] : memref<4x10xf32, #tpu.memory_space<smem>>
    %92 = vector.broadcast %91 : f32 to vector<1x128xf32>
    %93 = arith.mulf %5, %92 : vector<1x128xf32>
    %94 = arith.addf %90, %93 : vector<1x128xf32>
    %c3_49 = arith.constant 3 : index
    %c4_50 = arith.constant 4 : index
    %95 = memref.load %arg2[%c3_49, %c4_50] : memref<4x10xf32, #tpu.memory_space<smem>>
    %96 = vector.broadcast %95 : f32 to vector<1x128xf32>
    %97 = arith.mulf %7, %96 : vector<1x128xf32>
    %98 = arith.addf %94, %97 : vector<1x128xf32>
    %c4_51 = arith.constant 4 : index
    %99 = memref.load %arg3[%c4_51] : memref<10xf32, #tpu.memory_space<smem>>
    %100 = vector.broadcast %99 : f32 to vector<1x128xf32>
    %101 = arith.addf %98, %100 : vector<1x128xf32>
    %102 = math.tanh %101 : vector<1x128xf32>
    %c0_52 = arith.constant 0 : index
    %c5 = arith.constant 5 : index
    %103 = memref.load %arg2[%c0_52, %c5] : memref<4x10xf32, #tpu.memory_space<smem>>
    %104 = vector.broadcast %103 : f32 to vector<1x128xf32>
    %105 = arith.mulf %1, %104 : vector<1x128xf32>
    %c1_53 = arith.constant 1 : index
    %c5_54 = arith.constant 5 : index
    %106 = memref.load %arg2[%c1_53, %c5_54] : memref<4x10xf32, #tpu.memory_space<smem>>
    %107 = vector.broadcast %106 : f32 to vector<1x128xf32>
    %108 = arith.mulf %3, %107 : vector<1x128xf32>
    %109 = arith.addf %105, %108 : vector<1x128xf32>
    %c2_55 = arith.constant 2 : index
    %c5_56 = arith.constant 5 : index
    %110 = memref.load %arg2[%c2_55, %c5_56] : memref<4x10xf32, #tpu.memory_space<smem>>
    %111 = vector.broadcast %110 : f32 to vector<1x128xf32>
    %112 = arith.mulf %5, %111 : vector<1x128xf32>
    %113 = arith.addf %109, %112 : vector<1x128xf32>
    %c3_57 = arith.constant 3 : index
    %c5_58 = arith.constant 5 : index
    %114 = memref.load %arg2[%c3_57, %c5_58] : memref<4x10xf32, #tpu.memory_space<smem>>
    %115 = vector.broadcast %114 : f32 to vector<1x128xf32>
    %116 = arith.mulf %7, %115 : vector<1x128xf32>
    %117 = arith.addf %113, %116 : vector<1x128xf32>
    %c5_59 = arith.constant 5 : index
    %118 = memref.load %arg3[%c5_59] : memref<10xf32, #tpu.memory_space<smem>>
    %119 = vector.broadcast %118 : f32 to vector<1x128xf32>
    %120 = arith.addf %117, %119 : vector<1x128xf32>
    %121 = math.tanh %120 : vector<1x128xf32>
    %c0_60 = arith.constant 0 : index
    %c6 = arith.constant 6 : index
    %122 = memref.load %arg2[%c0_60, %c6] : memref<4x10xf32, #tpu.memory_space<smem>>
    %123 = vector.broadcast %122 : f32 to vector<1x128xf32>
    %124 = arith.mulf %1, %123 : vector<1x128xf32>
    %c1_61 = arith.constant 1 : index
    %c6_62 = arith.constant 6 : index
    %125 = memref.load %arg2[%c1_61, %c6_62] : memref<4x10xf32, #tpu.memory_space<smem>>
    %126 = vector.broadcast %125 : f32 to vector<1x128xf32>
    %127 = arith.mulf %3, %126 : vector<1x128xf32>
    %128 = arith.addf %124, %127 : vector<1x128xf32>
    %c2_63 = arith.constant 2 : index
    %c6_64 = arith.constant 6 : index
    %129 = memref.load %arg2[%c2_63, %c6_64] : memref<4x10xf32, #tpu.memory_space<smem>>
    %130 = vector.broadcast %129 : f32 to vector<1x128xf32>
    %131 = arith.mulf %5, %130 : vector<1x128xf32>
    %132 = arith.addf %128, %131 : vector<1x128xf32>
    %c3_65 = arith.constant 3 : index
    %c6_66 = arith.constant 6 : index
    %133 = memref.load %arg2[%c3_65, %c6_66] : memref<4x10xf32, #tpu.memory_space<smem>>
    %134 = vector.broadcast %133 : f32 to vector<1x128xf32>
    %135 = arith.mulf %7, %134 : vector<1x128xf32>
    %136 = arith.addf %132, %135 : vector<1x128xf32>
    %c6_67 = arith.constant 6 : index
    %137 = memref.load %arg3[%c6_67] : memref<10xf32, #tpu.memory_space<smem>>
    %138 = vector.broadcast %137 : f32 to vector<1x128xf32>
    %139 = arith.addf %136, %138 : vector<1x128xf32>
    %140 = math.tanh %139 : vector<1x128xf32>
    %c0_68 = arith.constant 0 : index
    %c7 = arith.constant 7 : index
    %141 = memref.load %arg2[%c0_68, %c7] : memref<4x10xf32, #tpu.memory_space<smem>>
    %142 = vector.broadcast %141 : f32 to vector<1x128xf32>
    %143 = arith.mulf %1, %142 : vector<1x128xf32>
    %c1_69 = arith.constant 1 : index
    %c7_70 = arith.constant 7 : index
    %144 = memref.load %arg2[%c1_69, %c7_70] : memref<4x10xf32, #tpu.memory_space<smem>>
    %145 = vector.broadcast %144 : f32 to vector<1x128xf32>
    %146 = arith.mulf %3, %145 : vector<1x128xf32>
    %147 = arith.addf %143, %146 : vector<1x128xf32>
    %c2_71 = arith.constant 2 : index
    %c7_72 = arith.constant 7 : index
    %148 = memref.load %arg2[%c2_71, %c7_72] : memref<4x10xf32, #tpu.memory_space<smem>>
    %149 = vector.broadcast %148 : f32 to vector<1x128xf32>
    %150 = arith.mulf %5, %149 : vector<1x128xf32>
    %151 = arith.addf %147, %150 : vector<1x128xf32>
    %c3_73 = arith.constant 3 : index
    %c7_74 = arith.constant 7 : index
    %152 = memref.load %arg2[%c3_73, %c7_74] : memref<4x10xf32, #tpu.memory_space<smem>>
    %153 = vector.broadcast %152 : f32 to vector<1x128xf32>
    %154 = arith.mulf %7, %153 : vector<1x128xf32>
    %155 = arith.addf %151, %154 : vector<1x128xf32>
    %c7_75 = arith.constant 7 : index
    %156 = memref.load %arg3[%c7_75] : memref<10xf32, #tpu.memory_space<smem>>
    %157 = vector.broadcast %156 : f32 to vector<1x128xf32>
    %158 = arith.addf %155, %157 : vector<1x128xf32>
    %159 = math.tanh %158 : vector<1x128xf32>
    %c0_76 = arith.constant 0 : index
    %c8 = arith.constant 8 : index
    %160 = memref.load %arg2[%c0_76, %c8] : memref<4x10xf32, #tpu.memory_space<smem>>
    %161 = vector.broadcast %160 : f32 to vector<1x128xf32>
    %162 = arith.mulf %1, %161 : vector<1x128xf32>
    %c1_77 = arith.constant 1 : index
    %c8_78 = arith.constant 8 : index
    %163 = memref.load %arg2[%c1_77, %c8_78] : memref<4x10xf32, #tpu.memory_space<smem>>
    %164 = vector.broadcast %163 : f32 to vector<1x128xf32>
    %165 = arith.mulf %3, %164 : vector<1x128xf32>
    %166 = arith.addf %162, %165 : vector<1x128xf32>
    %c2_79 = arith.constant 2 : index
    %c8_80 = arith.constant 8 : index
    %167 = memref.load %arg2[%c2_79, %c8_80] : memref<4x10xf32, #tpu.memory_space<smem>>
    %168 = vector.broadcast %167 : f32 to vector<1x128xf32>
    %169 = arith.mulf %5, %168 : vector<1x128xf32>
    %170 = arith.addf %166, %169 : vector<1x128xf32>
    %c3_81 = arith.constant 3 : index
    %c8_82 = arith.constant 8 : index
    %171 = memref.load %arg2[%c3_81, %c8_82] : memref<4x10xf32, #tpu.memory_space<smem>>
    %172 = vector.broadcast %171 : f32 to vector<1x128xf32>
    %173 = arith.mulf %7, %172 : vector<1x128xf32>
    %174 = arith.addf %170, %173 : vector<1x128xf32>
    %c8_83 = arith.constant 8 : index
    %175 = memref.load %arg3[%c8_83] : memref<10xf32, #tpu.memory_space<smem>>
    %176 = vector.broadcast %175 : f32 to vector<1x128xf32>
    %177 = arith.addf %174, %176 : vector<1x128xf32>
    %178 = math.tanh %177 : vector<1x128xf32>
    %c0_84 = arith.constant 0 : index
    %c9 = arith.constant 9 : index
    %179 = memref.load %arg2[%c0_84, %c9] : memref<4x10xf32, #tpu.memory_space<smem>>
    %180 = vector.broadcast %179 : f32 to vector<1x128xf32>
    %181 = arith.mulf %1, %180 : vector<1x128xf32>
    %c1_85 = arith.constant 1 : index
    %c9_86 = arith.constant 9 : index
    %182 = memref.load %arg2[%c1_85, %c9_86] : memref<4x10xf32, #tpu.memory_space<smem>>
    %183 = vector.broadcast %182 : f32 to vector<1x128xf32>
    %184 = arith.mulf %3, %183 : vector<1x128xf32>
    %185 = arith.addf %181, %184 : vector<1x128xf32>
    %c2_87 = arith.constant 2 : index
    %c9_88 = arith.constant 9 : index
    %186 = memref.load %arg2[%c2_87, %c9_88] : memref<4x10xf32, #tpu.memory_space<smem>>
    %187 = vector.broadcast %186 : f32 to vector<1x128xf32>
    %188 = arith.mulf %5, %187 : vector<1x128xf32>
    %189 = arith.addf %185, %188 : vector<1x128xf32>
    %c3_89 = arith.constant 3 : index
    %c9_90 = arith.constant 9 : index
    %190 = memref.load %arg2[%c3_89, %c9_90] : memref<4x10xf32, #tpu.memory_space<smem>>
    %191 = vector.broadcast %190 : f32 to vector<1x128xf32>
    %192 = arith.mulf %7, %191 : vector<1x128xf32>
    %193 = arith.addf %189, %192 : vector<1x128xf32>
    %c9_91 = arith.constant 9 : index
    %194 = memref.load %arg3[%c9_91] : memref<10xf32, #tpu.memory_space<smem>>
    %195 = vector.broadcast %194 : f32 to vector<1x128xf32>
    %196 = arith.addf %193, %195 : vector<1x128xf32>
    %197 = math.tanh %196 : vector<1x128xf32>
    %c0_92 = arith.constant 0 : index
    %c0_93 = arith.constant 0 : index
    %198 = memref.load %arg4[%c0_92, %c0_93] : memref<10x4xf32, #tpu.memory_space<smem>>
    %199 = vector.broadcast %198 : f32 to vector<1x128xf32>
    %200 = arith.mulf %26, %199 : vector<1x128xf32>
    %c1_94 = arith.constant 1 : index
    %c0_95 = arith.constant 0 : index
    %201 = memref.load %arg4[%c1_94, %c0_95] : memref<10x4xf32, #tpu.memory_space<smem>>
    %202 = vector.broadcast %201 : f32 to vector<1x128xf32>
    %203 = arith.mulf %45, %202 : vector<1x128xf32>
    %204 = arith.addf %200, %203 : vector<1x128xf32>
    %c2_96 = arith.constant 2 : index
    %c0_97 = arith.constant 0 : index
    %205 = memref.load %arg4[%c2_96, %c0_97] : memref<10x4xf32, #tpu.memory_space<smem>>
    %206 = vector.broadcast %205 : f32 to vector<1x128xf32>
    %207 = arith.mulf %64, %206 : vector<1x128xf32>
    %208 = arith.addf %204, %207 : vector<1x128xf32>
    %c3_98 = arith.constant 3 : index
    %c0_99 = arith.constant 0 : index
    %209 = memref.load %arg4[%c3_98, %c0_99] : memref<10x4xf32, #tpu.memory_space<smem>>
    %210 = vector.broadcast %209 : f32 to vector<1x128xf32>
    %211 = arith.mulf %83, %210 : vector<1x128xf32>
    %212 = arith.addf %208, %211 : vector<1x128xf32>
    %c4_100 = arith.constant 4 : index
    %c0_101 = arith.constant 0 : index
    %213 = memref.load %arg4[%c4_100, %c0_101] : memref<10x4xf32, #tpu.memory_space<smem>>
    %214 = vector.broadcast %213 : f32 to vector<1x128xf32>
    %215 = arith.mulf %102, %214 : vector<1x128xf32>
    %216 = arith.addf %212, %215 : vector<1x128xf32>
    %c5_102 = arith.constant 5 : index
    %c0_103 = arith.constant 0 : index
    %217 = memref.load %arg4[%c5_102, %c0_103] : memref<10x4xf32, #tpu.memory_space<smem>>
    %218 = vector.broadcast %217 : f32 to vector<1x128xf32>
    %219 = arith.mulf %121, %218 : vector<1x128xf32>
    %220 = arith.addf %216, %219 : vector<1x128xf32>
    %c6_104 = arith.constant 6 : index
    %c0_105 = arith.constant 0 : index
    %221 = memref.load %arg4[%c6_104, %c0_105] : memref<10x4xf32, #tpu.memory_space<smem>>
    %222 = vector.broadcast %221 : f32 to vector<1x128xf32>
    %223 = arith.mulf %140, %222 : vector<1x128xf32>
    %224 = arith.addf %220, %223 : vector<1x128xf32>
    %c7_106 = arith.constant 7 : index
    %c0_107 = arith.constant 0 : index
    %225 = memref.load %arg4[%c7_106, %c0_107] : memref<10x4xf32, #tpu.memory_space<smem>>
    %226 = vector.broadcast %225 : f32 to vector<1x128xf32>
    %227 = arith.mulf %159, %226 : vector<1x128xf32>
    %228 = arith.addf %224, %227 : vector<1x128xf32>
    %c8_108 = arith.constant 8 : index
    %c0_109 = arith.constant 0 : index
    %229 = memref.load %arg4[%c8_108, %c0_109] : memref<10x4xf32, #tpu.memory_space<smem>>
    %230 = vector.broadcast %229 : f32 to vector<1x128xf32>
    %231 = arith.mulf %178, %230 : vector<1x128xf32>
    %232 = arith.addf %228, %231 : vector<1x128xf32>
    %c9_110 = arith.constant 9 : index
    %c0_111 = arith.constant 0 : index
    %233 = memref.load %arg4[%c9_110, %c0_111] : memref<10x4xf32, #tpu.memory_space<smem>>
    %234 = vector.broadcast %233 : f32 to vector<1x128xf32>
    %235 = arith.mulf %197, %234 : vector<1x128xf32>
    %236 = arith.addf %232, %235 : vector<1x128xf32>
    %c0_112 = arith.constant 0 : index
    %237 = memref.load %arg5[%c0_112] : memref<4xf32, #tpu.memory_space<smem>>
    %238 = vector.broadcast %237 : f32 to vector<1x128xf32>
    %239 = arith.addf %236, %238 : vector<1x128xf32>
    %c0_113 = arith.constant 0 : index
    %c1_114 = arith.constant 1 : index
    %240 = memref.load %arg4[%c0_113, %c1_114] : memref<10x4xf32, #tpu.memory_space<smem>>
    %241 = vector.broadcast %240 : f32 to vector<1x128xf32>
    %242 = arith.mulf %26, %241 : vector<1x128xf32>
    %c1_115 = arith.constant 1 : index
    %c1_116 = arith.constant 1 : index
    %243 = memref.load %arg4[%c1_115, %c1_116] : memref<10x4xf32, #tpu.memory_space<smem>>
    %244 = vector.broadcast %243 : f32 to vector<1x128xf32>
    %245 = arith.mulf %45, %244 : vector<1x128xf32>
    %246 = arith.addf %242, %245 : vector<1x128xf32>
    %c2_117 = arith.constant 2 : index
    %c1_118 = arith.constant 1 : index
    %247 = memref.load %arg4[%c2_117, %c1_118] : memref<10x4xf32, #tpu.memory_space<smem>>
    %248 = vector.broadcast %247 : f32 to vector<1x128xf32>
    %249 = arith.mulf %64, %248 : vector<1x128xf32>
    %250 = arith.addf %246, %249 : vector<1x128xf32>
    %c3_119 = arith.constant 3 : index
    %c1_120 = arith.constant 1 : index
    %251 = memref.load %arg4[%c3_119, %c1_120] : memref<10x4xf32, #tpu.memory_space<smem>>
    %252 = vector.broadcast %251 : f32 to vector<1x128xf32>
    %253 = arith.mulf %83, %252 : vector<1x128xf32>
    %254 = arith.addf %250, %253 : vector<1x128xf32>
    %c4_121 = arith.constant 4 : index
    %c1_122 = arith.constant 1 : index
    %255 = memref.load %arg4[%c4_121, %c1_122] : memref<10x4xf32, #tpu.memory_space<smem>>
    %256 = vector.broadcast %255 : f32 to vector<1x128xf32>
    %257 = arith.mulf %102, %256 : vector<1x128xf32>
    %258 = arith.addf %254, %257 : vector<1x128xf32>
    %c5_123 = arith.constant 5 : index
    %c1_124 = arith.constant 1 : index
    %259 = memref.load %arg4[%c5_123, %c1_124] : memref<10x4xf32, #tpu.memory_space<smem>>
    %260 = vector.broadcast %259 : f32 to vector<1x128xf32>
    %261 = arith.mulf %121, %260 : vector<1x128xf32>
    %262 = arith.addf %258, %261 : vector<1x128xf32>
    %c6_125 = arith.constant 6 : index
    %c1_126 = arith.constant 1 : index
    %263 = memref.load %arg4[%c6_125, %c1_126] : memref<10x4xf32, #tpu.memory_space<smem>>
    %264 = vector.broadcast %263 : f32 to vector<1x128xf32>
    %265 = arith.mulf %140, %264 : vector<1x128xf32>
    %266 = arith.addf %262, %265 : vector<1x128xf32>
    %c7_127 = arith.constant 7 : index
    %c1_128 = arith.constant 1 : index
    %267 = memref.load %arg4[%c7_127, %c1_128] : memref<10x4xf32, #tpu.memory_space<smem>>
    %268 = vector.broadcast %267 : f32 to vector<1x128xf32>
    %269 = arith.mulf %159, %268 : vector<1x128xf32>
    %270 = arith.addf %266, %269 : vector<1x128xf32>
    %c8_129 = arith.constant 8 : index
    %c1_130 = arith.constant 1 : index
    %271 = memref.load %arg4[%c8_129, %c1_130] : memref<10x4xf32, #tpu.memory_space<smem>>
    %272 = vector.broadcast %271 : f32 to vector<1x128xf32>
    %273 = arith.mulf %178, %272 : vector<1x128xf32>
    %274 = arith.addf %270, %273 : vector<1x128xf32>
    %c9_131 = arith.constant 9 : index
    %c1_132 = arith.constant 1 : index
    %275 = memref.load %arg4[%c9_131, %c1_132] : memref<10x4xf32, #tpu.memory_space<smem>>
    %276 = vector.broadcast %275 : f32 to vector<1x128xf32>
    %277 = arith.mulf %197, %276 : vector<1x128xf32>
    %278 = arith.addf %274, %277 : vector<1x128xf32>
    %c1_133 = arith.constant 1 : index
    %279 = memref.load %arg5[%c1_133] : memref<4xf32, #tpu.memory_space<smem>>
    %280 = vector.broadcast %279 : f32 to vector<1x128xf32>
    %281 = arith.addf %278, %280 : vector<1x128xf32>
    %c0_134 = arith.constant 0 : index
    %c2_135 = arith.constant 2 : index
    %282 = memref.load %arg4[%c0_134, %c2_135] : memref<10x4xf32, #tpu.memory_space<smem>>
    %283 = vector.broadcast %282 : f32 to vector<1x128xf32>
    %284 = arith.mulf %26, %283 : vector<1x128xf32>
    %c1_136 = arith.constant 1 : index
    %c2_137 = arith.constant 2 : index
    %285 = memref.load %arg4[%c1_136, %c2_137] : memref<10x4xf32, #tpu.memory_space<smem>>
    %286 = vector.broadcast %285 : f32 to vector<1x128xf32>
    %287 = arith.mulf %45, %286 : vector<1x128xf32>
    %288 = arith.addf %284, %287 : vector<1x128xf32>
    %c2_138 = arith.constant 2 : index
    %c2_139 = arith.constant 2 : index
    %289 = memref.load %arg4[%c2_138, %c2_139] : memref<10x4xf32, #tpu.memory_space<smem>>
    %290 = vector.broadcast %289 : f32 to vector<1x128xf32>
    %291 = arith.mulf %64, %290 : vector<1x128xf32>
    %292 = arith.addf %288, %291 : vector<1x128xf32>
    %c3_140 = arith.constant 3 : index
    %c2_141 = arith.constant 2 : index
    %293 = memref.load %arg4[%c3_140, %c2_141] : memref<10x4xf32, #tpu.memory_space<smem>>
    %294 = vector.broadcast %293 : f32 to vector<1x128xf32>
    %295 = arith.mulf %83, %294 : vector<1x128xf32>
    %296 = arith.addf %292, %295 : vector<1x128xf32>
    %c4_142 = arith.constant 4 : index
    %c2_143 = arith.constant 2 : index
    %297 = memref.load %arg4[%c4_142, %c2_143] : memref<10x4xf32, #tpu.memory_space<smem>>
    %298 = vector.broadcast %297 : f32 to vector<1x128xf32>
    %299 = arith.mulf %102, %298 : vector<1x128xf32>
    %300 = arith.addf %296, %299 : vector<1x128xf32>
    %c5_144 = arith.constant 5 : index
    %c2_145 = arith.constant 2 : index
    %301 = memref.load %arg4[%c5_144, %c2_145] : memref<10x4xf32, #tpu.memory_space<smem>>
    %302 = vector.broadcast %301 : f32 to vector<1x128xf32>
    %303 = arith.mulf %121, %302 : vector<1x128xf32>
    %304 = arith.addf %300, %303 : vector<1x128xf32>
    %c6_146 = arith.constant 6 : index
    %c2_147 = arith.constant 2 : index
    %305 = memref.load %arg4[%c6_146, %c2_147] : memref<10x4xf32, #tpu.memory_space<smem>>
    %306 = vector.broadcast %305 : f32 to vector<1x128xf32>
    %307 = arith.mulf %140, %306 : vector<1x128xf32>
    %308 = arith.addf %304, %307 : vector<1x128xf32>
    %c7_148 = arith.constant 7 : index
    %c2_149 = arith.constant 2 : index
    %309 = memref.load %arg4[%c7_148, %c2_149] : memref<10x4xf32, #tpu.memory_space<smem>>
    %310 = vector.broadcast %309 : f32 to vector<1x128xf32>
    %311 = arith.mulf %159, %310 : vector<1x128xf32>
    %312 = arith.addf %308, %311 : vector<1x128xf32>
    %c8_150 = arith.constant 8 : index
    %c2_151 = arith.constant 2 : index
    %313 = memref.load %arg4[%c8_150, %c2_151] : memref<10x4xf32, #tpu.memory_space<smem>>
    %314 = vector.broadcast %313 : f32 to vector<1x128xf32>
    %315 = arith.mulf %178, %314 : vector<1x128xf32>
    %316 = arith.addf %312, %315 : vector<1x128xf32>
    %c9_152 = arith.constant 9 : index
    %c2_153 = arith.constant 2 : index
    %317 = memref.load %arg4[%c9_152, %c2_153] : memref<10x4xf32, #tpu.memory_space<smem>>
    %318 = vector.broadcast %317 : f32 to vector<1x128xf32>
    %319 = arith.mulf %197, %318 : vector<1x128xf32>
    %320 = arith.addf %316, %319 : vector<1x128xf32>
    %c2_154 = arith.constant 2 : index
    %321 = memref.load %arg5[%c2_154] : memref<4xf32, #tpu.memory_space<smem>>
    %322 = vector.broadcast %321 : f32 to vector<1x128xf32>
    %323 = arith.addf %320, %322 : vector<1x128xf32>
    %c0_155 = arith.constant 0 : index
    %c3_156 = arith.constant 3 : index
    %324 = memref.load %arg4[%c0_155, %c3_156] : memref<10x4xf32, #tpu.memory_space<smem>>
    %325 = vector.broadcast %324 : f32 to vector<1x128xf32>
    %326 = arith.mulf %26, %325 : vector<1x128xf32>
    %c1_157 = arith.constant 1 : index
    %c3_158 = arith.constant 3 : index
    %327 = memref.load %arg4[%c1_157, %c3_158] : memref<10x4xf32, #tpu.memory_space<smem>>
    %328 = vector.broadcast %327 : f32 to vector<1x128xf32>
    %329 = arith.mulf %45, %328 : vector<1x128xf32>
    %330 = arith.addf %326, %329 : vector<1x128xf32>
    %c2_159 = arith.constant 2 : index
    %c3_160 = arith.constant 3 : index
    %331 = memref.load %arg4[%c2_159, %c3_160] : memref<10x4xf32, #tpu.memory_space<smem>>
    %332 = vector.broadcast %331 : f32 to vector<1x128xf32>
    %333 = arith.mulf %64, %332 : vector<1x128xf32>
    %334 = arith.addf %330, %333 : vector<1x128xf32>
    %c3_161 = arith.constant 3 : index
    %c3_162 = arith.constant 3 : index
    %335 = memref.load %arg4[%c3_161, %c3_162] : memref<10x4xf32, #tpu.memory_space<smem>>
    %336 = vector.broadcast %335 : f32 to vector<1x128xf32>
    %337 = arith.mulf %83, %336 : vector<1x128xf32>
    %338 = arith.addf %334, %337 : vector<1x128xf32>
    %c4_163 = arith.constant 4 : index
    %c3_164 = arith.constant 3 : index
    %339 = memref.load %arg4[%c4_163, %c3_164] : memref<10x4xf32, #tpu.memory_space<smem>>
    %340 = vector.broadcast %339 : f32 to vector<1x128xf32>
    %341 = arith.mulf %102, %340 : vector<1x128xf32>
    %342 = arith.addf %338, %341 : vector<1x128xf32>
    %c5_165 = arith.constant 5 : index
    %c3_166 = arith.constant 3 : index
    %343 = memref.load %arg4[%c5_165, %c3_166] : memref<10x4xf32, #tpu.memory_space<smem>>
    %344 = vector.broadcast %343 : f32 to vector<1x128xf32>
    %345 = arith.mulf %121, %344 : vector<1x128xf32>
    %346 = arith.addf %342, %345 : vector<1x128xf32>
    %c6_167 = arith.constant 6 : index
    %c3_168 = arith.constant 3 : index
    %347 = memref.load %arg4[%c6_167, %c3_168] : memref<10x4xf32, #tpu.memory_space<smem>>
    %348 = vector.broadcast %347 : f32 to vector<1x128xf32>
    %349 = arith.mulf %140, %348 : vector<1x128xf32>
    %350 = arith.addf %346, %349 : vector<1x128xf32>
    %c7_169 = arith.constant 7 : index
    %c3_170 = arith.constant 3 : index
    %351 = memref.load %arg4[%c7_169, %c3_170] : memref<10x4xf32, #tpu.memory_space<smem>>
    %352 = vector.broadcast %351 : f32 to vector<1x128xf32>
    %353 = arith.mulf %159, %352 : vector<1x128xf32>
    %354 = arith.addf %350, %353 : vector<1x128xf32>
    %c8_171 = arith.constant 8 : index
    %c3_172 = arith.constant 3 : index
    %355 = memref.load %arg4[%c8_171, %c3_172] : memref<10x4xf32, #tpu.memory_space<smem>>
    %356 = vector.broadcast %355 : f32 to vector<1x128xf32>
    %357 = arith.mulf %178, %356 : vector<1x128xf32>
    %358 = arith.addf %354, %357 : vector<1x128xf32>
    %c9_173 = arith.constant 9 : index
    %c3_174 = arith.constant 3 : index
    %359 = memref.load %arg4[%c9_173, %c3_174] : memref<10x4xf32, #tpu.memory_space<smem>>
    %360 = vector.broadcast %359 : f32 to vector<1x128xf32>
    %361 = arith.mulf %197, %360 : vector<1x128xf32>
    %362 = arith.addf %358, %361 : vector<1x128xf32>
    %c3_175 = arith.constant 3 : index
    %363 = memref.load %arg5[%c3_175] : memref<4xf32, #tpu.memory_space<smem>>
    %364 = vector.broadcast %363 : f32 to vector<1x128xf32>
    %365 = arith.addf %362, %364 : vector<1x128xf32>
    %366 = arith.maximumf %239, %281 : vector<1x128xf32>
    %367 = arith.maximumf %366, %323 : vector<1x128xf32>
    %368 = arith.maximumf %367, %365 : vector<1x128xf32>
    %369 = arith.subf %239, %368 : vector<1x128xf32>
    %370 = arith.subf %281, %368 : vector<1x128xf32>
    %371 = arith.subf %323, %368 : vector<1x128xf32>
    %372 = arith.subf %365, %368 : vector<1x128xf32>
    %373 = math.exp %369 : vector<1x128xf32>
    %374 = math.exp %370 : vector<1x128xf32>
    %375 = arith.addf %373, %374 : vector<1x128xf32>
    %376 = math.exp %371 : vector<1x128xf32>
    %377 = arith.addf %375, %376 : vector<1x128xf32>
    %378 = math.exp %372 : vector<1x128xf32>
    %379 = arith.addf %377, %378 : vector<1x128xf32>
    %380 = math.log %379 : vector<1x128xf32>
    %381 = arith.subf %369, %380 : vector<1x128xf32>
    %c0_176 = arith.constant 0 : index
    %c0_177 = arith.constant 0 : index
    %c0_178 = arith.constant 0 : index
    %382 = vector.load %arg6[%c0_176, %c0_177, %c0_178] : memref<4x1x128xf32, #tpu.memory_space<vmem>>, vector<1x1x128xf32>
    %383 = vector.shape_cast %382 : vector<1x1x128xf32> to vector<1x128xf32>
    %384 = vector.shape_cast %381 : vector<1x128xf32> to vector<1x1x128xf32>
    tpu.vector_store %arg6[%c0_176, %c0_177, %c0_178], %384 {strides = array<i32>} : memref<4x1x128xf32, #tpu.memory_space<vmem>>, vector<1x1x128xf32>,
    %385 = arith.subf %370, %380 : vector<1x128xf32>
    %c1_179 = arith.constant 1 : index
    %c0_180 = arith.constant 0 : index
    %c0_181 = arith.constant 0 : index
    %386 = vector.load %arg6[%c1_179, %c0_180, %c0_181] : memref<4x1x128xf32, #tpu.memory_space<vmem>>, vector<1x1x128xf32>
    %387 = vector.shape_cast %386 : vector<1x1x128xf32> to vector<1x128xf32>
    %388 = vector.shape_cast %385 : vector<1x128xf32> to vector<1x1x128xf32>
    tpu.vector_store %arg6[%c1_179, %c0_180, %c0_181], %388 {strides = array<i32>} : memref<4x1x128xf32, #tpu.memory_space<vmem>>, vector<1x1x128xf32>,
    %389 = arith.subf %371, %380 : vector<1x128xf32>
    %c2_182 = arith.constant 2 : index
    %c0_183 = arith.constant 0 : index
    %c0_184 = arith.constant 0 : index
    %390 = vector.load %arg6[%c2_182, %c0_183, %c0_184] : memref<4x1x128xf32, #tpu.memory_space<vmem>>, vector<1x1x128xf32>
    %391 = vector.shape_cast %390 : vector<1x1x128xf32> to vector<1x128xf32>
    %392 = vector.shape_cast %389 : vector<1x128xf32> to vector<1x1x128xf32>
    tpu.vector_store %arg6[%c2_182, %c0_183, %c0_184], %392 {strides = array<i32>} : memref<4x1x128xf32, #tpu.memory_space<vmem>>, vector<1x1x128xf32>,
    %393 = arith.subf %372, %380 : vector<1x128xf32>
    %c3_185 = arith.constant 3 : index
    %c0_186 = arith.constant 0 : index
    %c0_187 = arith.constant 0 : index
    %394 = vector.load %arg6[%c3_185, %c0_186, %c0_187] : memref<4x1x128xf32, #tpu.memory_space<vmem>>, vector<1x1x128xf32>
    %395 = vector.shape_cast %394 : vector<1x1x128xf32> to vector<1x128xf32>
    %396 = vector.shape_cast %393 : vector<1x128xf32> to vector<1x1x128xf32>
    tpu.vector_store %arg6[%c3_185, %c0_186, %c0_187], %396 {strides = array<i32>} : memref<4x1x128xf32, #tpu.memory_space<vmem>>, vector<1x1x128xf32>,
    return
  }
  func.func @transform_0(%arg0: i32) -> (i32, i32, i32) {
    %c0_i32 = arith.constant 0 : i32
    %c0_i32_0 = arith.constant 0 : i32
    %c0_i32_1 = arith.constant 0 : i32
    return %c0_i32, %arg0, %c0_i32_0 : i32, i32, i32
  }
  func.func @transform_1(%arg0: i32) -> (i32, i32) {
    %c0_i32 = arith.constant 0 : i32
    %c0_i32_0 = arith.constant 0 : i32
    %c0_i32_1 = arith.constant 0 : i32
    return %c0_i32, %c0_i32_0 : i32, i32
  }
  func.func @transform_2(%arg0: i32) -> i32 {
    %c0_i32 = arith.constant 0 : i32
    %c0_i32_0 = arith.constant 0 : i32
    return %c0_i32 : i32
  }
  func.func @transform_3(%arg0: i32) -> (i32, i32) {
    %c0_i32 = arith.constant 0 : i32
    %c0_i32_0 = arith.constant 0 : i32
    %c0_i32_1 = arith.constant 0 : i32
    return %c0_i32, %c0_i32_0 : i32, i32
  }
  func.func @transform_4(%arg0: i32) -> i32 {
    %c0_i32 = arith.constant 0 : i32
    %c0_i32_0 = arith.constant 0 : i32
    return %c0_i32 : i32
  }
  func.func @transform_5(%arg0: i32) -> (i32, i32, i32) {
    %c0_i32 = arith.constant 0 : i32
    %c0_i32_0 = arith.constant 0 : i32
    %c0_i32_1 = arith.constant 0 : i32
    return %c0_i32, %arg0, %c0_i32_0 : i32, i32, i32
  }
}

</mosaic_0001>

<llo_original>
// kernel: net_forward.1
$region0: #{net_forward.1}
  #allocation0 [shape = 'u32[]', space=smem, size = 0x4, offset = 0x4, fixed_abs, tag = 'smem constant byte address 0x4 - core index']
  #allocation1 [shape = 'u32[144,128]{1,0:T(1,128)}', space=vmem, size = 0x12000, scoped, tag = 'internal scratch']
  %s0 = inlined_call_operand.vmem [shape: f32[4,1,128], index: 0, kind: input, shape index: {}]
  %s1 = inlined_call_operand.vmem [shape: f32[4,10], index: 1, kind: input, shape index: {}]
  %s2 = inlined_call_operand.vmem [shape: f32[10], index: 2, kind: input, shape index: {}]
  %s3 = inlined_call_operand.vmem [shape: f32[10,4], index: 3, kind: input, shape index: {}]
  %s4 = inlined_call_operand.vmem [shape: f32[4], index: 4, kind: input, shape index: {}]
  %s5 = inlined_call_operand.hbm [shape: f32[4,1,128], index: 5, kind: output, shape index: {}]
  %s6 = sld [smem:[#allocation0]]
  $region46: #{net_forward.1} parent=0
    _
  %s8 = ssub.s32 1, %s6
  %s9 = scalar_select 0, %s8, %s6
  $region1: #{net_forward.1} parent=0
    #allocation2 [shape = 'u8[2048]{0}', space=smem, size = 0x800, scoped, tag = 'input window, operand 1, single buffered']
    #allocation3 [shape = 's32[1]{0}', space=sflag, size = 0x4, scoped, tag = 'scoped memory for net_forward.1']
    #allocation4 [shape = 's32[1]{0}', space=sflag, size = 0x4, scoped, tag = 'scoped memory for net_forward.1']
    #allocation5 [shape = 'u8[512]{0}', space=smem, size = 0x200, scoped, tag = 'input window, operand 2, single buffered']
    #allocation6 [shape = 's32[1]{0}', space=sflag, size = 0x4, scoped, tag = 'scoped memory for net_forward.1']
    #allocation7 [shape = 'u8[8192]{0}', space=smem, size = 0x2000, scoped, tag = 'input window, operand 3, single buffered']
    #allocation8 [shape = 'u8[512]{0}', space=smem, size = 0x200, scoped, tag = 'input window, operand 4, single buffered']
    #allocation9 [shape = 's32[1]{0}', space=sflag, size = 0x4, scoped, tag = 'scoped memory for net_forward.1']
    #allocation10 [shape = 'u8[2048]{0}', space=vmem, size = 0x800, scoped, tag = 'output window, operand 0, single buffered']
    %10 = vsyncpa [#allocation4], 0
    %11 = vsyncpa [#allocation6], 0
    %12 = vsyncpa [#allocation9], 0
    %13 = vsyncpa [#allocation3], 0
    // Predicated region
    $region2: #{net_forward.1} parent=1 // pred_check
      _
    $region3: #{net_forward.1} parent=1 // pred_check_branch
      %15 = sbr.rel (0) target = $region5
    $region4: #{net_forward.1} parent=1 // pred_region
      _
    $region5: #{net_forward.1} parent=1 // pred_fallthru
      _
    // Predicated region
    $region6: #{net_forward.1} parent=1 // pred_check
      _
    $region7: #{net_forward.1} parent=1 // pred_check_branch
      %17 = sbr.rel (0) target = $region9
    $region8: #{net_forward.1} parent=1 // pred_region
      %s19 = ssub.s32 64, 64
      %20 = vsyncadd [#allocation4], %s19
      %s22 = sshll.u32 %s1, 4
      %s23 = int_to_ptr.vmem [resolvable:$true] %s22
      %25 = dma.vmem_to_smem %s23, 64, [#allocation2], [#allocation4]
    $region9: #{net_forward.1} parent=1 // pred_fallthru
      _
    // Predicated region
    $region10: #{net_forward.1} parent=1 // pred_check
      _
    $region11: #{net_forward.1} parent=1 // pred_check_branch
      %27 = sbr.rel (0) target = $region13
    $region12: #{net_forward.1} parent=1 // pred_region
      %s29 = ssub.s32 16, 16
      %30 = vsyncadd [#allocation6], %s29
      %s32 = sshll.u32 %s2, 4
      %s33 = int_to_ptr.vmem [resolvable:$true] %s32
      %35 = dma.vmem_to_smem %s33, 16, [#allocation5], [#allocation6]
    $region13: #{net_forward.1} parent=1 // pred_fallthru
      _
    // Predicated region
    $region14: #{net_forward.1} parent=1 // pred_check
      _
    $region15: #{net_forward.1} parent=1 // pred_check_branch
      %37 = sbr.rel (0) target = $region17
    $region16: #{net_forward.1} parent=1 // pred_region
      %s39 = ssub.s32 256, 256
      %40 = vsyncadd [#allocation6], %s39
      %s41 = sshll.u32 %s3, 4
      %s42 = int_to_ptr.vmem [resolvable:$true] %s41
      %47 = dma.vmem_to_smem %s42, 256, [#allocation7], [#allocation6], 128, 128, 8
    $region17: #{net_forward.1} parent=1 // pred_fallthru
      _
    // Predicated region
    $region18: #{net_forward.1} parent=1 // pred_check
      _
    $region19: #{net_forward.1} parent=1 // pred_check_branch
      %49 = sbr.rel (0) target = $region21
    $region20: #{net_forward.1} parent=1 // pred_region
      %s51 = ssub.s32 16, 16
      %52 = vsyncadd [#allocation9], %s51
      %s54 = sshll.u32 %s4, 4
      %s55 = int_to_ptr.vmem [resolvable:$true] %s54
      %57 = dma.vmem_to_smem %s55, 16, [#allocation8], [#allocation9]
    $region21: #{net_forward.1} parent=1 // pred_fallthru
      _
    // Predicated region
    $region22: #{net_forward.1} parent=1 // pred_check
      _
    $region23: #{net_forward.1} parent=1 // pred_check_branch
      %59 = sbr.rel (0) target = $region25
    $region24: #{net_forward.1} parent=1 // pred_region
      %60 = dma.done [#allocation4], 64
    $region25: #{net_forward.1} parent=1 // pred_fallthru
      _
    // Predicated region
    $region26: #{net_forward.1} parent=1 // pred_check
      _
    $region27: #{net_forward.1} parent=1 // pred_check_branch
      %62 = sbr.rel (0) target = $region29
    $region28: #{net_forward.1} parent=1 // pred_region
      %63 = dma.done [#allocation6], 16
    $region29: #{net_forward.1} parent=1 // pred_fallthru
      _
    // Predicated region
    $region30: #{net_forward.1} parent=1 // pred_check
      _
    $region31: #{net_forward.1} parent=1 // pred_check_branch
      %65 = sbr.rel (0) target = $region33
    $region32: #{net_forward.1} parent=1 // pred_region
      %66 = dma.done [#allocation6], 256
    $region33: #{net_forward.1} parent=1 // pred_fallthru
      _
    // Predicated region
    $region34: #{net_forward.1} parent=1 // pred_check
      _
    $region35: #{net_forward.1} parent=1 // pred_check_branch
      %68 = sbr.rel (0) target = $region37
    $region36: #{net_forward.1} parent=1 // pred_region
      %69 = dma.done [#allocation9], 16
    $region37: #{net_forward.1} parent=1 // pred_fallthru
      _
    %70 = sfence
    %v71 = vld [vmem:[%s0] sm:$0x1]
    %s72 = scalar_lea.vmem %s0, 1
    %v73 = vld [vmem:[%s72] sm:$0x1]
    %s74 = scalar_lea.vmem %s0, 2
    %v75 = vld [vmem:[%s74] sm:$0x1]
    %s76 = scalar_lea.vmem %s0, 3
    %v77 = vld [vmem:[%s76] sm:$0x1]
    %s78 = sld [smem:[#allocation2]]
    %v79 = vstv %s78
    %v80 = vmul.f32 %v71, %v79
    %s81 = sld [smem:[#allocation2 + $0x80]]
    %v82 = vstv %s81
    %v83 = vmul.f32 %v73, %v82
    %v84 = vadd.f32 %v80, %v83
    %s85 = sld [smem:[#allocation2 + $0x100]]
    %v86 = vstv %s85
    %v87 = vmul.f32 %v75, %v86
    %v88 = vadd.f32 %v84, %v87
    %s89 = sld [smem:[#allocation2 + $0x180]]
    %v90 = vstv %s89
    %v91 = vmul.f32 %v77, %v90
    %v92 = vadd.f32 %v88, %v91
    %s93 = sld [smem:[#allocation5]]
    %v94 = vstv %s93
    %v95 = vadd.f32 %v92, %v94
    %v96 = vtanh.pop %v95
    %s97 = sld [smem:[#allocation2 + $0x1]]
    %v98 = vstv %s97
    %v99 = vmul.f32 %v71, %v98
    %s100 = sld [smem:[#allocation2 + $0x81]]
    %v101 = vstv %s100
    %v102 = vmul.f32 %v73, %v101
    %v103 = vadd.f32 %v99, %v102
    %s104 = sld [smem:[#allocation2 + $0x101]]
    %v105 = vstv %s104
    %v106 = vmul.f32 %v75, %v105
    %v107 = vadd.f32 %v103, %v106
    %s108 = sld [smem:[#allocation2 + $0x181]]
    %v109 = vstv %s108
    %v110 = vmul.f32 %v77, %v109
    %v111 = vadd.f32 %v107, %v110
    %s112 = sld [smem:[#allocation5 + $0x1]]
    %v113 = vstv %s112
    %v114 = vadd.f32 %v111, %v113
    %v115 = vtanh.pop %v114
    %s116 = sld [smem:[#allocation2 + $0x2]]
    %v117 = vstv %s116
    %v118 = vmul.f32 %v71, %v117
    %s119 = sld [smem:[#allocation2 + $0x82]]
    %v120 = vstv %s119
    %v121 = vmul.f32 %v73, %v120
    %v122 = vadd.f32 %v118, %v121
    %s123 = sld [smem:[#allocation2 + $0x102]]
    %v124 = vstv %s123
    %v125 = vmul.f32 %v75, %v124
    %v126 = vadd.f32 %v122, %v125
    %s127 = sld [smem:[#allocation2 + $0x182]]
    %v128 = vstv %s127
    %v129 = vmul.f32 %v77, %v128
    %v130 = vadd.f32 %v126, %v129
    %s131 = sld [smem:[#allocation5 + $0x2]]
    %v132 = vstv %s131
    %v133 = vadd.f32 %v130, %v132
    %v134 = vtanh.pop %v133
    %s135 = sld [smem:[#allocation2 + $0x3]]
    %v136 = vstv %s135
    %v137 = vmul.f32 %v71, %v136
    %s138 = sld [smem:[#allocation2 + $0x83]]
    %v139 = vstv %s138
    %v140 = vmul.f32 %v73, %v139
    %v141 = vadd.f32 %v137, %v140
    %s142 = sld [smem:[#allocation2 + $0x103]]
    %v143 = vstv %s142
    %v144 = vmul.f32 %v75, %v143
    %v145 = vadd.f32 %v141, %v144
    %s146 = sld [smem:[#allocation2 + $0x183]]
    %v147 = vstv %s146
    %v148 = vmul.f32 %v77, %v147
    %v149 = vadd.f32 %v145, %v148
    %s150 = sld [smem:[#allocation5 + $0x3]]
    %v151 = vstv %s150
    %v152 = vadd.f32 %v149, %v151
    %v153 = vtanh.pop %v152
    %s154 = sld [smem:[#allocation2 + $0x4]]
    %v155 = vstv %s154
    %v156 = vmul.f32 %v71, %v155
    %s157 = sld [smem:[#allocation2 + $0x84]]
    %v158 = vstv %s157
    %v159 = vmul.f32 %v73, %v158
    %v160 = vadd.f32 %v156, %v159
    %s161 = sld [smem:[#allocation2 + $0x104]]
    %v162 = vstv %s161
    %v163 = vmul.f32 %v75, %v162
    %v164 = vadd.f32 %v160, %v163
    %s165 = sld [smem:[#allocation2 + $0x184]]
    %v166 = vstv %s165
    %v167 = vmul.f32 %v77, %v166
    %v168 = vadd.f32 %v164, %v167
    %s169 = sld [smem:[#allocation5 + $0x4]]
    %v170 = vstv %s169
    %v171 = vadd.f32 %v168, %v170
    %v172 = vtanh.pop %v171
    %s173 = sld [smem:[#allocation2 + $0x5]]
    %v174 = vstv %s173
    %v175 = vmul.f32 %v71, %v174
    %s176 = sld [smem:[#allocation2 + $0x85]]
    %v177 = vstv %s176
    %v178 = vmul.f32 %v73, %v177
    %v179 = vadd.f32 %v175, %v178
    %s180 = sld [smem:[#allocation2 + $0x105]]
    %v181 = vstv %s180
    %v182 = vmul.f32 %v75, %v181
    %v183 = vadd.f32 %v179, %v182
    %s184 = sld [smem:[#allocation2 + $0x185]]
    %v185 = vstv %s184
    %v186 = vmul.f32 %v77, %v185
    %v187 = vadd.f32 %v183, %v186
    %s188 = sld [smem:[#allocation5 + $0x5]]
    %v189 = vstv %s188
    %v190 = vadd.f32 %v187, %v189
    %v191 = vtanh.pop %v190
    %s192 = sld [smem:[#allocation2 + $0x6]]
    %v193 = vstv %s192
    %v194 = vmul.f32 %v71, %v193
    %s195 = sld [smem:[#allocation2 + $0x86]]
    %v196 = vstv %s195
    %v197 = vmul.f32 %v73, %v196
    %v198 = vadd.f32 %v194, %v197
    %s199 = sld [smem:[#allocation2 + $0x106]]
    %v200 = vstv %s199
    %v201 = vmul.f32 %v75, %v200
    %v202 = vadd.f32 %v198, %v201
    %s203 = sld [smem:[#allocation2 + $0x186]]
    %v204 = vstv %s203
    %v205 = vmul.f32 %v77, %v204
    %v206 = vadd.f32 %v202, %v205
    %s207 = sld [smem:[#allocation5 + $0x6]]
    %v208 = vstv %s207
    %v209 = vadd.f32 %v206, %v208
    %v210 = vtanh.pop %v209
    %s211 = sld [smem:[#allocation2 + $0x7]]
    %v212 = vstv %s211
    %v213 = vmul.f32 %v71, %v212
    %s214 = sld [smem:[#allocation2 + $0x87]]
    %v215 = vstv %s214
    %v216 = vmul.f32 %v73, %v215
    %v217 = vadd.f32 %v213, %v216
    %s218 = sld [smem:[#allocation2 + $0x107]]
    %v219 = vstv %s218
    %v220 = vmul.f32 %v75, %v219
    %v221 = vadd.f32 %v217, %v220
    %s222 = sld [smem:[#allocation2 + $0x187]]
    %v223 = vstv %s222
    %v224 = vmul.f32 %v77, %v223
    %v225 = vadd.f32 %v221, %v224
    %s226 = sld [smem:[#allocation5 + $0x7]]
    %v227 = vstv %s226
    %v228 = vadd.f32 %v225, %v227
    %v229 = vtanh.pop %v228
    %s230 = sld [smem:[#allocation2 + $0x8]]
    %v231 = vstv %s230
    %v232 = vmul.f32 %v71, %v231
    %s233 = sld [smem:[#allocation2 + $0x88]]
    %v234 = vstv %s233
    %v235 = vmul.f32 %v73, %v234
    %v236 = vadd.f32 %v232, %v235
    %s237 = sld [smem:[#allocation2 + $0x108]]
    %v238 = vstv %s237
    %v239 = vmul.f32 %v75, %v238
    %v240 = vadd.f32 %v236, %v239
    %s241 = sld [smem:[#allocation2 + $0x188]]
    %v242 = vstv %s241
    %v243 = vmul.f32 %v77, %v242
    %v244 = vadd.f32 %v240, %v243
    %s245 = sld [smem:[#allocation5 + $0x8]]
    %v246 = vstv %s245
    %v247 = vadd.f32 %v244, %v246
    %v248 = vtanh.pop %v247
    %s249 = sld [smem:[#allocation2 + $0x9]]
    %v250 = vstv %s249
    %v251 = vmul.f32 %v71, %v250
    %s252 = sld [smem:[#allocation2 + $0x89]]
    %v253 = vstv %s252
    %v254 = vmul.f32 %v73, %v253
    %v255 = vadd.f32 %v251, %v254
    %s256 = sld [smem:[#allocation2 + $0x109]]
    %v257 = vstv %s256
    %v258 = vmul.f32 %v75, %v257
    %v259 = vadd.f32 %v255, %v258
    %s260 = sld [smem:[#allocation2 + $0x189]]
    %v261 = vstv %s260
    %v262 = vmul.f32 %v77, %v261
    %v263 = vadd.f32 %v259, %v262
    %s264 = sld [smem:[#allocation5 + $0x9]]
    %v265 = vstv %s264
    %v266 = vadd.f32 %v263, %v265
    %v267 = vtanh.pop %v266
    %s268 = sld [smem:[#allocation7]]
    %v269 = vstv %s268
    %v270 = vmul.f32 %v96, %v269
    %s271 = sld [smem:[#allocation7 + $0x80]]
    %v272 = vstv %s271
    %v273 = vmul.f32 %v115, %v272
    %v274 = vadd.f32 %v270, %v273
    %s275 = sld [smem:[#allocation7 + $0x100]]
    %v276 = vstv %s275
    %v277 = vmul.f32 %v134, %v276
    %v278 = vadd.f32 %v274, %v277
    %s279 = sld [smem:[#allocation7 + $0x180]]
    %v280 = vstv %s279
    %v281 = vmul.f32 %v153, %v280
    %v282 = vadd.f32 %v278, %v281
    %s283 = sld [smem:[#allocation7 + $0x200]]
    %v284 = vstv %s283
    %v285 = vmul.f32 %v172, %v284
    %v286 = vadd.f32 %v282, %v285
    %s287 = sld [smem:[#allocation7 + $0x280]]
    %v288 = vstv %s287
    %v289 = vmul.f32 %v191, %v288
    %v290 = vadd.f32 %v286, %v289
    %s291 = sld [smem:[#allocation7 + $0x300]]
    %v292 = vstv %s291
    %v293 = vmul.f32 %v210, %v292
    %v294 = vadd.f32 %v290, %v293
    %s295 = sld [smem:[#allocation7 + $0x380]]
    %v296 = vstv %s295
    %v297 = vmul.f32 %v229, %v296
    %v298 = vadd.f32 %v294, %v297
    %s299 = sld [smem:[#allocation7 + $0x400]]
    %v300 = vstv %s299
    %v301 = vmul.f32 %v248, %v300
    %v302 = vadd.f32 %v298, %v301
    %s303 = sld [smem:[#allocation7 + $0x480]]
    %v304 = vstv %s303
    %v305 = vmul.f32 %v267, %v304
    %v306 = vadd.f32 %v302, %v305
    %s307 = sld [smem:[#allocation8]]
    %v308 = vstv %s307
    %v309 = vadd.f32 %v306, %v308
    %s310 = sld [smem:[#allocation7 + $0x1]]
    %v311 = vstv %s310
    %v312 = vmul.f32 %v96, %v311
    %s313 = sld [smem:[#allocation7 + $0x81]]
    %v314 = vstv %s313
    %v315 = vmul.f32 %v115, %v314
    %v316 = vadd.f32 %v312, %v315
    %s317 = sld [smem:[#allocation7 + $0x101]]
    %v318 = vstv %s317
    %v319 = vmul.f32 %v134, %v318
    %v320 = vadd.f32 %v316, %v319
    %s321 = sld [smem:[#allocation7 + $0x181]]
    %v322 = vstv %s321
    %v323 = vmul.f32 %v153, %v322
    %v324 = vadd.f32 %v320, %v323
    %s325 = sld [smem:[#allocation7 + $0x201]]
    %v326 = vstv %s325
    %v327 = vmul.f32 %v172, %v326
    %v328 = vadd.f32 %v324, %v327
    %s329 = sld [smem:[#allocation7 + $0x281]]
    %v330 = vstv %s329
    %v331 = vmul.f32 %v191, %v330
    %v332 = vadd.f32 %v328, %v331
    %s333 = sld [smem:[#allocation7 + $0x301]]
    %v334 = vstv %s333
    %v335 = vmul.f32 %v210, %v334
    %v336 = vadd.f32 %v332, %v335
    %s337 = sld [smem:[#allocation7 + $0x381]]
    %v338 = vstv %s337
    %v339 = vmul.f32 %v229, %v338
    %v340 = vadd.f32 %v336, %v339
    %s341 = sld [smem:[#allocation7 + $0x401]]
    %v342 = vstv %s341
    %v343 = vmul.f32 %v248, %v342
    %v344 = vadd.f32 %v340, %v343
    %s345 = sld [smem:[#allocation7 + $0x481]]
    %v346 = vstv %s345
    %v347 = vmul.f32 %v267, %v346
    %v348 = vadd.f32 %v344, %v347
    %s349 = sld [smem:[#allocation8 + $0x1]]
    %v350 = vstv %s349
    %v351 = vadd.f32 %v348, %v350
    %s352 = sld [smem:[#allocation7 + $0x2]]
    %v353 = vstv %s352
    %v354 = vmul.f32 %v96, %v353
    %s355 = sld [smem:[#allocation7 + $0x82]]
    %v356 = vstv %s355
    %v357 = vmul.f32 %v115, %v356
    %v358 = vadd.f32 %v354, %v357
    %s359 = sld [smem:[#allocation7 + $0x102]]
    %v360 = vstv %s359
    %v361 = vmul.f32 %v134, %v360
    %v362 = vadd.f32 %v358, %v361
    %s363 = sld [smem:[#allocation7 + $0x182]]
    %v364 = vstv %s363
    %v365 = vmul.f32 %v153, %v364
    %v366 = vadd.f32 %v362, %v365
    %s367 = sld [smem:[#allocation7 + $0x202]]
    %v368 = vstv %s367
    %v369 = vmul.f32 %v172, %v368
    %v370 = vadd.f32 %v366, %v369
    %s371 = sld [smem:[#allocation7 + $0x282]]
    %v372 = vstv %s371
    %v373 = vmul.f32 %v191, %v372
    %v374 = vadd.f32 %v370, %v373
    %s375 = sld [smem:[#allocation7 + $0x302]]
    %v376 = vstv %s375
    %v377 = vmul.f32 %v210, %v376
    %v378 = vadd.f32 %v374, %v377
    %s379 = sld [smem:[#allocation7 + $0x382]]
    %v380 = vstv %s379
    %v381 = vmul.f32 %v229, %v380
    %v382 = vadd.f32 %v378, %v381
    %s383 = sld [smem:[#allocation7 + $0x402]]
    %v384 = vstv %s383
    %v385 = vmul.f32 %v248, %v384
    %v386 = vadd.f32 %v382, %v385
    %s387 = sld [smem:[#allocation7 + $0x482]]
    %v388 = vstv %s387
    %v389 = vmul.f32 %v267, %v388
    %v390 = vadd.f32 %v386, %v389
    %s391 = sld [smem:[#allocation8 + $0x2]]
    %v392 = vstv %s391
    %v393 = vadd.f32 %v390, %v392
    %s394 = sld [smem:[#allocation7 + $0x3]]
    %v395 = vstv %s394
    %v396 = vmul.f32 %v96, %v395
    %s397 = sld [smem:[#allocation7 + $0x83]]
    %v398 = vstv %s397
    %v399 = vmul.f32 %v115, %v398
    %v400 = vadd.f32 %v396, %v399
    %s401 = sld [smem:[#allocation7 + $0x103]]
    %v402 = vstv %s401
    %v403 = vmul.f32 %v134, %v402
    %v404 = vadd.f32 %v400, %v403
    %s405 = sld [smem:[#allocation7 + $0x183]]
    %v406 = vstv %s405
    %v407 = vmul.f32 %v153, %v406
    %v408 = vadd.f32 %v404, %v407
    %s409 = sld [smem:[#allocation7 + $0x203]]
    %v410 = vstv %s409
    %v411 = vmul.f32 %v172, %v410
    %v412 = vadd.f32 %v408, %v411
    %s413 = sld [smem:[#allocation7 + $0x283]]
    %v414 = vstv %s413
    %v415 = vmul.f32 %v191, %v414
    %v416 = vadd.f32 %v412, %v415
    %s417 = sld [smem:[#allocation7 + $0x303]]
    %v418 = vstv %s417
    %v419 = vmul.f32 %v210, %v418
    %v420 = vadd.f32 %v416, %v419
    %s421 = sld [smem:[#allocation7 + $0x383]]
    %v422 = vstv %s421
    %v423 = vmul.f32 %v229, %v422
    %v424 = vadd.f32 %v420, %v423
    %s425 = sld [smem:[#allocation7 + $0x403]]
    %v426 = vstv %s425
    %v427 = vmul.f32 %v248, %v426
    %v428 = vadd.f32 %v424, %v427
    %s429 = sld [smem:[#allocation7 + $0x483]]
    %v430 = vstv %s429
    %v431 = vmul.f32 %v267, %v430
    %v432 = vadd.f32 %v428, %v431
    %s433 = sld [smem:[#allocation8 + $0x3]]
    %v434 = vstv %s433
    %v435 = vadd.f32 %v432, %v434
    %v436 = vmax.f32 %v309, %v351
    %v437 = vmax.f32 %v436, %v393
    %v438 = vmax.f32 %v437, %v435
    %v439 = vsub.f32 %v309, %v438
    %v440 = vsub.f32 %v351, %v438
    %v441 = vsub.f32 %v393, %v438
    %v442 = vsub.f32 %v435, %v438
    %v443 = vmul.f32 %v439, 1.442695
    %v444 = vpow.pop %v443
    %v445 = vmul.f32 %v440, 1.442695
    %v446 = vpow.pop %v445
    %v447 = vadd.f32 %v444, %v446
    %v448 = vmul.f32 %v441, 1.442695
    %v449 = vpow.pop %v448
    %v450 = vadd.f32 %v447, %v449
    %v451 = vmul.f32 %v442, 1.442695
    %v452 = vpow.pop %v451
    %v453 = vadd.f32 %v450, %v452
    %v454 = vlog2.pop %v453
    %v455 = vmul.f32 %v454, 0.6931472
    %v456 = vsub.f32 %v439, %v455
    %457 = vst [vmem:[#allocation10] sm:$0x1] %v456
    %v458 = vsub.f32 %v440, %v455
    %s459 = scalar_lea.vmem [#allocation10], 1
    %460 = vst [vmem:[%s459] sm:$0x1] %v458
    %v461 = vsub.f32 %v441, %v455
    %s462 = scalar_lea.vmem [#allocation10], 2
    %463 = vst [vmem:[%s462] sm:$0x1] %v461
    %v464 = vsub.f32 %v442, %v455
    %s465 = scalar_lea.vmem [#allocation10], 3
    %466 = vst [vmem:[%s465] sm:$0x1] %v464
    // Predicated region
    $region38: #{net_forward.1} parent=1 // pred_check
      _
    $region39: #{net_forward.1} parent=1 // pred_check_branch
      %468 = sbr.rel (0) target = $region41
    $region40: #{net_forward.1} parent=1 // pred_region
      %s470 = ssub.s32 64, 64
      %471 = vsyncadd [#allocation3], %s470
      %s472 = sshll.u32 [#allocation10], 4
      %s473 = int_to_ptr.vmem [resolvable:$true] %s472
      %478 = dma.vmem_to_hbm [thread:$0]  %s473, 64, %s5, [#allocation3], 16, 16, 1
    $region41: #{net_forward.1} parent=1 // pred_fallthru
      _
    // Predicated region
    $region42: #{net_forward.1} parent=1 // pred_check
      _
    $region43: #{net_forward.1} parent=1 // pred_check_branch
      %480 = sbr.rel (0) target = $region45
    $region44: #{net_forward.1} parent=1 // pred_region
      %481 = dma.done [#allocation3], 64
    $region45: #{net_forward.1} parent=1 // pred_fallthru
      _
    %482 = vsyncpa [#allocation3], 1
    %483 = vsyncpa [#allocation4], 1
    %484 = vsyncpa [#allocation6], 1
    %485 = vsyncpa [#allocation9], 1

</llo_original>
